<compile_context>
chip_gen: v7x
topology: tpu7x:2x2x1
jax: 0.10.0
libtpu: 0.0.40
codegen_flags: <defaults>
</compile_context>

<pallas_src>
import jax
import jax.numpy as jnp
from jax import lax
from jax.experimental import pallas as pl
from jax.experimental.pallas import tpu as pltpu

EPS = 1e-6
_RO = 8   # sublane-aligned row offset of the current block inside the scratch


def _make_kernel(TH, W, NR):
    RO = _RO
    FIRST = min(8, TH)          # rows folded together with the r==0 row mask
    NG = TH // 8                # number of full 8-row groups
    REM = TH - 8 * NG           # leftover rows (only possible when NR == 1)

    def kernel(d_ref, t_ref, out_ref, sd_ref, st_ref, acc_ref):
        # d_ref, t_ref : (1, 3, TH, W) input row blocks
        # out_ref      : (1, 8, W)     per-batch lane-wise partial sums
        # sd_ref/st_ref: (TH+8, W+2)   channel-sum scratch; columns 0 and W+1
        #                are zero borders, rows 6..7 carry the previous row
        #                block's last two channel-sum rows (vertical halo).
        # acc_ref      : (8, W)        lane-wise running Charbonnier sum
        #
        # NOTE: the halo carry relies on grid axis 1 staying the innermost,
        # sequentially executed ("arbitrary") axis and on scratch persistence
        # across grid steps.  Do not reorder the grid.
        r = pl.program_id(1)

        @pl.when(r == 0)
        def _init():
            # Zero only what is not overwritten every step: the 8 halo rows on
            # top and the single zero column on each side of the image data.
            sd_ref[0:RO, :] = jnp.zeros((RO, W + 2), jnp.float32)
            st_ref[0:RO, :] = jnp.zeros((RO, W + 2), jnp.float32)
            sd_ref[:, 0:1] = jnp.zeros((TH + RO, 1), jnp.float32)
            st_ref[:, 0:1] = jnp.zeros((TH + RO, 1), jnp.float32)
            sd_ref[:, W + 1:W + 2] = jnp.zeros((TH + RO, 1), jnp.float32)
            st_ref[:, W + 1:W + 2] = jnp.zeros((TH + RO, 1), jnp.float32)
            acc_ref[...] = jnp.zeros_like(acc_ref)

        # The reference broadcasts the *same* 3x3 kernel over the 3 input
        # channels, so conv(x, w) == conv2d(sum_c x_c, k): sum channels once.
        def edge_block(x_ref, s_ref):
            s = (x_ref[0, 0].astype(jnp.float32)
                 + x_ref[0, 1].astype(jnp.float32)
                 + x_ref[0, 2].astype(jnp.float32))           # (TH, W)
            s_ref[RO:RO + TH, 1:1 + W] = s
            se = s_ref[...]                                   # (TH+8, W+2)
            # Output row m of this block is image row r*TH - 1 + m and needs
            # channel-sum rows m-1, m, m+1 == scratch rows RO-2+m .. RO+m.
            top = se[RO - 2:RO - 2 + TH, :]
            mid = se[RO - 1:RO - 1 + TH, :]
            bot = se[RO:RO + TH, :]
            rowv = top + 2.0 * mid + bot                      # (TH, W+2)
            rowh = top - bot                                  # (TH, W+2)
            # Lane pass: output column j uses scratch columns j, j+1, j+2.
            gx = rowv[:, 0:W] - rowv[:, 2:2 + W]
            gy = rowh[:, 0:W] + 2.0 * rowh[:, 1:1 + W] + rowh[:, 2:2 + W]
            return jnp.abs(gx) + jnp.abs(gy)                  # (TH, W)

        ed = edge_block(d_ref, sd_ref)
        et = edge_block(t_ref, st_ref)
        diff = ed - et
        err = jnp.sqrt(diff * diff + EPS)                     # (TH, W)

        # Lane-wise accumulation.  Row m == 0 is image row r*TH - 1, which
        # does not exist when r == 0 and is masked out of the first group.
        row_ids = lax.broadcasted_iota(jnp.int32, (FIRST, W), 0)
        part = jnp.where(jnp.logical_and(row_ids == 0, r == 0),
                         0.0, err[0:FIRST, :])
        for g in range(1, NG):
            part = part + err[8 * g:8 * g + 8, :]
        acc_ref[0:FIRST, :] += part
        if TH > 8 and REM:
            acc_ref[0:REM, :] += err[8 * NG:8 * NG + REM, :]

        if NR > 1:
            @pl.when(r < NR - 1)
            def _carry():
                # Carry the last channel-sum rows (incl. their zero side
                # borders) as the vertical halo for the next row block.
                sd_ref[0:RO, :] = sd_ref[TH:TH + RO, :]
                st_ref[0:RO, :] = st_ref[TH:TH + RO, :]

        @pl.when(r == NR - 1)
        def _finalize():
            # Image row H - 1: its bottom neighbour is the (implicit) zero pad.
            def last_edge(s_ref):
                a = s_ref[RO + TH - 2:RO + TH - 1, :]         # s[H-2], (1, W+2)
                b = s_ref[RO + TH - 1:RO + TH, :]             # s[H-1], (1, W+2)
                rv = a + 2.0 * b
                rh = a
                gx = rv[:, 0:W] - rv[:, 2:2 + W]
                gy = rh[:, 0:W] + 2.0 * rh[:, 1:1 + W] + rh[:, 2:2 + W]
                return jnp.abs(gx) + jnp.abs(gy)              # (1, W)

            dl = last_edge(sd_ref) - last_edge(st_ref)
            el = jnp.sqrt(dl * dl + EPS)
            acc_ref[0:1, :] += el
            out_ref[0] = acc_ref[...]

    return kernel


def _vmem_cap_bytes():
    """Physical VMEM per TensorCore, with a conservative fallback."""
    try:
        info = pltpu.get_tpu_info()
        for attr in ("vmem_capacity_bytes", "vmem_bytes", "vmem_size_bytes"):
            cap = getattr(info, attr, None)
            if cap:
                return int(cap)
    except Exception:
        pass
    return 64 * 1024 * 1024        # v7x per-TensorCore VMEM (smallest current)


def _vmem_est_bytes(TH, W, in_itemsize):
    """Rough per-step VMEM footprint: double-buffered inputs + scratch + temps."""
    lw_in = ((W + 127) // 128) * 128
    lw_sc = ((W + 2 + 127) // 128) * 128
    th8 = ((TH + 7) // 8) * 8
    inputs = 2 * 2 * 3 * th8 * lw_in * in_itemsize   # 2 tensors, 2x buffered
    scratch = 2 * (th8 + _RO) * lw_sc * 4
    temps = 14 * (th8 + _RO) * lw_sc * 4             # live f32 value slab
    return inputs + scratch + temps + (4 << 20)


def _pick_row_tile(H, W, in_itemsize, cap):
    """Largest multiple-of-8 divisor of H whose footprint fits the VMEM budget."""
    budget = int(cap * 0.85)
    divs = [th for th in range(8, H + 1, 8) if H % th == 0]
    if not divs:
        return H          # block == full dim is always a legal BlockSpec
    fits = [th for th in divs if _vmem_est_bytes(th, W, in_itemsize) <= budget]
    return max(fits) if fits else min(divs)


def _vmem_limit_bytes(TH, W, in_itemsize, cap):
    est = _vmem_est_bytes(TH, W, in_itemsize)
    return int(min(max(est, 32 * 1024 * 1024), int(cap * 0.95)))


def l1_asl_loss(demoire, image_target, *, row_tile=None):
    """demoire, image_target: (B, 3, H, W).  Returns the scalar L1_ASL loss."""
    B, C, H, W = demoire.shape
    assert C == 3, "AdvancedSobel expects 3 input channels"
    assert image_target.shape == demoire.shape
    assert H >= 2

    cap = _vmem_cap_bytes()
    itemsize = jnp.dtype(demoire.dtype).itemsize
    if row_tile is None:
        TH = _pick_row_tile(H, W, itemsize, cap)
    else:
        TH = row_tile
        assert H % TH == 0 and (TH % 8 == 0 or TH == H), "bad row_tile"
    NR = H // TH

    out = pl.pallas_call(
        _make_kernel(TH, W, NR),
        out_shape=jax.ShapeDtypeStruct((B, 8, W), jnp.float32),
        grid_spec=pltpu.PrefetchScalarGridSpec(
            num_scalar_prefetch=0,
            grid=(B, NR),
            in_specs=[
                pl.BlockSpec((1, 3, TH, W), lambda b, r: (b, 0, r, 0)),
                pl.BlockSpec((1, 3, TH, W), lambda b, r: (b, 0, r, 0)),
            ],
            out_specs=pl.BlockSpec((1, 8, W), lambda b, r: (b, 0, 0)),
            scratch_shapes=[
                pltpu.VMEM((TH + _RO, W + 2), jnp.float32),
                pltpu.VMEM((TH + _RO, W + 2), jnp.float32),
                pltpu.VMEM((8, W), jnp.float32),
            ],
        ),
        compiler_params=pltpu.CompilerParams(
            # Row-block axis must stay sequential ("arbitrary"): the vertical
            # halo is carried in VMEM scratch between consecutive steps.
            dimension_semantics=("parallel", "arbitrary"),
            vmem_limit_bytes=_vmem_limit_bytes(TH, W, itemsize, cap),
        ),
    )(demoire, image_target)
    # TODO(synk): for B == 1 on v7x (2 TensorCores) add a second parallel grid
    # axis splitting the rows into two independent halves so both cores work.
    return jnp.sum(out)


def _reference_loss(demoire, image_target):
    """Pure-JAX reference mirroring the PyTorch L1_ASL module."""
    kx = jnp.array([[1, 0, -1], [2, 0, -2], [1, 0, -1]], jnp.float32)
    ky = jnp.array([[1, 2, 1], [0, 0, 0], [-1, -2, -1]], jnp.float32)
    wx = jnp.broadcast_to(kx, (1, 3, 3, 3))  # OIHW
    wy = jnp.broadcast_to(ky, (1, 3, 3, 3))

    def conv(x, w):
        return lax.conv_general_dilated(
            x.astype(jnp.float32), w, window_strides=(1, 1),
            padding=((1, 1), (1, 1)),
            dimension_numbers=("NCHW", "OIHW", "NCHW"),
            precision=lax.Precision.HIGHEST)

    def edge(x):
        return jnp.abs(conv(x, wx)) + jnp.abs(conv(x, wy))

    diff = edge(demoire) - edge(image_target)
    return jnp.sum(jnp.sqrt(diff * diff + EPS))


if __name__ == "__main__":
    key = jax.random.PRNGKey(0)
    k1, k2, k3, k4, k5, k6 = jax.random.split(key, 6)
    B, C = 2, 3

    # single row-block path
    d1 = jax.random.normal(k1, (B, C, 16, 16), dtype=jnp.float32)
    t1 = jax.random.normal(k2, (B, C, 16, 16), dtype=jnp.float32)
    loss1 = jax.block_until_ready(l1_asl_loss(d1, t1))
    ref1 = jax.block_until_ready(_reference_loss(d1, t1))
    assert jnp.allclose(loss1, ref1, rtol=1e-3, atol=1e-2), (loss1, ref1)

    # multi row-block path (exercises the cross-tile vertical-halo carry)
    d2 = jax.random.normal(k3, (B, C, 32, 16), dtype=jnp.float32)
    t2 = jax.random.normal(k4, (B, C, 32, 16), dtype=jnp.float32)
    loss2 = jax.block_until_ready(l1_asl_loss(d2, t2, row_tile=8))
    ref2 = jax.block_until_ready(_reference_loss(d2, t2))
    assert jnp.allclose(loss2, ref2, rtol=1e-3, atol=1e-2), (loss2, ref2)

    # H not a multiple of 8 (single block, remainder-row accumulation path)
    d3 = jax.random.normal(k5, (B, C, 10, 16), dtype=jnp.float32)
    t3 = jax.random.normal(k6, (B, C, 10, 16), dtype=jnp.float32)
    loss3 = jax.block_until_ready(l1_asl_loss(d3, t3))
    ref3 = jax.block_until_ready(_reference_loss(d3, t3))
    assert jnp.allclose(loss3, ref3, rtol=1e-3, atol=1e-2), (loss3, ref3)

    print("KERNEL_OK")
</pallas_src>

<mosaic_0001>
module attributes {stable_mosaic.version = 11 : i64} {
  func.func @kernel(%arg0: i32, %arg1: i32, %arg2: memref<1x3x16x16xf32, #tpu.memory_space<vmem>>, %arg3: memref<1x3x16x16xf32, #tpu.memory_space<vmem>>, %arg4: memref<1x8x16xf32, #tpu.memory_space<vmem>>, %arg5: memref<24x18xf32, #tpu.memory_space<vmem>>, %arg6: memref<24x18xf32, #tpu.memory_space<vmem>>, %arg7: memref<8x16xf32, #tpu.memory_space<vmem>>) attributes {dimension_semantics = [#tpu.dimension_semantics<parallel>, #tpu.dimension_semantics<arbitrary>], iteration_bounds = array<i64: 2, 1>, scalar_prefetch = 0 : i64, scratch_operands = 3 : i64, tpu.core_type = #tpu.core_type<tc>, window_params = [{transform_indices = @transform_0, window_bounds = array<i64: 1, 3, 16, 16>}, {transform_indices = @transform_1, window_bounds = array<i64: 1, 3, 16, 16>}, {transform_indices = @transform_2, window_bounds = array<i64: 1, 8, 16>}]} {
    %c0_i32 = arith.constant 0 : i32
    %0 = arith.cmpi eq, %arg1, %c0_i32 : i32
    %1 = arith.extui %0 : i1 to i32
    %c0_i32_0 = arith.constant 0 : i32
    %2 = arith.cmpi ne, %1, %c0_i32_0 : i32
    scf.if %2 {
      %cst_42 = arith.constant 0.000000e+00 : f32
      %87 = vector.broadcast %cst_42 : f32 to vector<8x18xf32>
      %c0_43 = arith.constant 0 : index
      %c0_44 = arith.constant 0 : index
      %88 = vector.load %arg5[%c0_43, %c0_44] : memref<24x18xf32, #tpu.memory_space<vmem>>, vector<8x18xf32>
      tpu.vector_store %arg5[%c0_43, %c0_44], %87 {strides = array<i32>} : memref<24x18xf32, #tpu.memory_space<vmem>>, vector<8x18xf32>,
      %cst_45 = arith.constant 0.000000e+00 : f32
      %89 = vector.broadcast %cst_45 : f32 to vector<8x18xf32>
      %c0_46 = arith.constant 0 : index
      %c0_47 = arith.constant 0 : index
      %90 = vector.load %arg6[%c0_46, %c0_47] : memref<24x18xf32, #tpu.memory_space<vmem>>, vector<8x18xf32>
      tpu.vector_store %arg6[%c0_46, %c0_47], %89 {strides = array<i32>} : memref<24x18xf32, #tpu.memory_space<vmem>>, vector<8x18xf32>,
      %cst_48 = arith.constant 0.000000e+00 : f32
      %91 = vector.broadcast %cst_48 : f32 to vector<24x1xf32>
      %c0_49 = arith.constant 0 : index
      %c0_50 = arith.constant 0 : index
      %92 = vector.load %arg5[%c0_49, %c0_50] : memref<24x18xf32, #tpu.memory_space<vmem>>, vector<24x1xf32>
      tpu.vector_store %arg5[%c0_49, %c0_50], %91 {strides = array<i32>} : memref<24x18xf32, #tpu.memory_space<vmem>>, vector<24x1xf32>,
      %cst_51 = arith.constant 0.000000e+00 : f32
      %93 = vector.broadcast %cst_51 : f32 to vector<24x1xf32>
      %c0_52 = arith.constant 0 : index
      %c0_53 = arith.constant 0 : index
      %94 = vector.load %arg6[%c0_52, %c0_53] : memref<24x18xf32, #tpu.memory_space<vmem>>, vector<24x1xf32>
      tpu.vector_store %arg6[%c0_52, %c0_53], %93 {strides = array<i32>} : memref<24x18xf32, #tpu.memory_space<vmem>>, vector<24x1xf32>,
      %cst_54 = arith.constant 0.000000e+00 : f32
      %95 = vector.broadcast %cst_54 : f32 to vector<24x1xf32>
      %c0_55 = arith.constant 0 : index
      %c17 = arith.constant 17 : index
      %96 = vector.load %arg5[%c0_55, %c17] : memref<24x18xf32, #tpu.memory_space<vmem>>, vector<24x1xf32>
      tpu.vector_store %arg5[%c0_55, %c17], %95 {strides = array<i32>} : memref<24x18xf32, #tpu.memory_space<vmem>>, vector<24x1xf32>,
      %cst_56 = arith.constant 0.000000e+00 : f32
      %97 = vector.broadcast %cst_56 : f32 to vector<24x1xf32>
      %c0_57 = arith.constant 0 : index
      %c17_58 = arith.constant 17 : index
      %98 = vector.load %arg6[%c0_57, %c17_58] : memref<24x18xf32, #tpu.memory_space<vmem>>, vector<24x1xf32>
      tpu.vector_store %arg6[%c0_57, %c17_58], %97 {strides = array<i32>} : memref<24x18xf32, #tpu.memory_space<vmem>>, vector<24x1xf32>,
      %cst_59 = arith.constant 0.000000e+00 : f32
      %99 = vector.broadcast %cst_59 : f32 to vector<8x16xf32>
      %c0_60 = arith.constant 0 : index
      %c0_61 = arith.constant 0 : index
      %100 = vector.load %arg7[%c0_60, %c0_61] : memref<8x16xf32, #tpu.memory_space<vmem>>, vector<8x16xf32>
      tpu.vector_store %arg7[%c0_60, %c0_61], %99 {strides = array<i32>} : memref<8x16xf32, #tpu.memory_space<vmem>>, vector<8x16xf32>,
    } else {
    }
    %c0 = arith.constant 0 : index
    %c0_1 = arith.constant 0 : index
    %c0_2 = arith.constant 0 : index
    %c0_3 = arith.constant 0 : index
    %3 = vector.load %arg2[%c0, %c0_1, %c0_2, %c0_3] : memref<1x3x16x16xf32, #tpu.memory_space<vmem>>, vector<1x1x16x16xf32>
    %4 = vector.shape_cast %3 : vector<1x1x16x16xf32> to vector<16x16xf32>
    %c0_4 = arith.constant 0 : index
    %c1 = arith.constant 1 : index
    %c0_5 = arith.constant 0 : index
    %c0_6 = arith.constant 0 : index
    %5 = vector.load %arg2[%c0_4, %c1, %c0_5, %c0_6] : memref<1x3x16x16xf32, #tpu.memory_space<vmem>>, vector<1x1x16x16xf32>
    %6 = vector.shape_cast %5 : vector<1x1x16x16xf32> to vector<16x16xf32>
    %7 = arith.addf %4, %6 : vector<16x16xf32>
    %c0_7 = arith.constant 0 : index
    %c2 = arith.constant 2 : index
    %c0_8 = arith.constant 0 : index
    %c0_9 = arith.constant 0 : index
    %8 = vector.load %arg2[%c0_7, %c2, %c0_8, %c0_9] : memref<1x3x16x16xf32, #tpu.memory_space<vmem>>, vector<1x1x16x16xf32>
    %9 = vector.shape_cast %8 : vector<1x1x16x16xf32> to vector<16x16xf32>
    %10 = arith.addf %7, %9 : vector<16x16xf32>
    %c8 = arith.constant 8 : index
    %c1_10 = arith.constant 1 : index
    %11 = vector.load %arg5[%c8, %c1_10] : memref<24x18xf32, #tpu.memory_space<vmem>>, vector<16x16xf32>
    tpu.vector_store %arg5[%c8, %c1_10], %10 {strides = array<i32>} : memref<24x18xf32, #tpu.memory_space<vmem>>, vector<16x16xf32>,
    %c0_11 = arith.constant 0 : index
    %c0_12 = arith.constant 0 : index
    %12 = vector.load %arg5[%c0_11, %c0_12] : memref<24x18xf32, #tpu.memory_space<vmem>>, vector<24x18xf32>
    %13 = vector.extract_strided_slice %12 {offsets = [6, 0], sizes = [16, 18], strides = [1, 1]} : vector<24x18xf32> to vector<16x18xf32>
    %14 = vector.extract_strided_slice %12 {offsets = [7, 0], sizes = [16, 18], strides = [1, 1]} : vector<24x18xf32> to vector<16x18xf32>
    %15 = vector.extract_strided_slice %12 {offsets = [8, 0], sizes = [16, 18], strides = [1, 1]} : vector<24x18xf32> to vector<16x18xf32>
    %cst = arith.constant 2.000000e+00 : f32
    %16 = vector.broadcast %cst : f32 to vector<16x18xf32>
    %17 = arith.mulf %16, %14 : vector<16x18xf32>
    %18 = arith.addf %13, %17 : vector<16x18xf32>
    %19 = arith.addf %18, %15 : vector<16x18xf32>
    %20 = arith.subf %13, %15 : vector<16x18xf32>
    %21 = vector.extract_strided_slice %19 {offsets = [0, 0], sizes = [16, 16], strides = [1, 1]} : vector<16x18xf32> to vector<16x16xf32>
    %22 = vector.extract_strided_slice %19 {offsets = [0, 2], sizes = [16, 16], strides = [1, 1]} : vector<16x18xf32> to vector<16x16xf32>
    %23 = arith.subf %21, %22 : vector<16x16xf32>
    %24 = vector.extract_strided_slice %20 {offsets = [0, 0], sizes = [16, 16], strides = [1, 1]} : vector<16x18xf32> to vector<16x16xf32>
    %25 = vector.extract_strided_slice %20 {offsets = [0, 1], sizes = [16, 16], strides = [1, 1]} : vector<16x18xf32> to vector<16x16xf32>
    %cst_13 = arith.constant 2.000000e+00 : f32
    %26 = vector.broadcast %cst_13 : f32 to vector<16x16xf32>
    %27 = arith.mulf %26, %25 : vector<16x16xf32>
    %28 = arith.addf %24, %27 : vector<16x16xf32>
    %29 = vector.extract_strided_slice %20 {offsets = [0, 2], sizes = [16, 16], strides = [1, 1]} : vector<16x18xf32> to vector<16x16xf32>
    %30 = arith.addf %28, %29 : vector<16x16xf32>
    %31 = math.absf %23 : vector<16x16xf32>
    %32 = math.absf %30 : vector<16x16xf32>
    %33 = arith.addf %31, %32 : vector<16x16xf32>
    %c0_14 = arith.constant 0 : index
    %c0_15 = arith.constant 0 : index
    %c0_16 = arith.constant 0 : index
    %c0_17 = arith.constant 0 : index
    %34 = vector.load %arg3[%c0_14, %c0_15, %c0_16, %c0_17] : memref<1x3x16x16xf32, #tpu.memory_space<vmem>>, vector<1x1x16x16xf32>
    %35 = vector.shape_cast %34 : vector<1x1x16x16xf32> to vector<16x16xf32>
    %c0_18 = arith.constant 0 : index
    %c1_19 = arith.constant 1 : index
    %c0_20 = arith.constant 0 : index
    %c0_21 = arith.constant 0 : index
    %36 = vector.load %arg3[%c0_18, %c1_19, %c0_20, %c0_21] : memref<1x3x16x16xf32, #tpu.memory_space<vmem>>, vector<1x1x16x16xf32>
    %37 = vector.shape_cast %36 : vector<1x1x16x16xf32> to vector<16x16xf32>
    %38 = arith.addf %35, %37 : vector<16x16xf32>
    %c0_22 = arith.constant 0 : index
    %c2_23 = arith.constant 2 : index
    %c0_24 = arith.constant 0 : index
    %c0_25 = arith.constant 0 : index
    %39 = vector.load %arg3[%c0_22, %c2_23, %c0_24, %c0_25] : memref<1x3x16x16xf32, #tpu.memory_space<vmem>>, vector<1x1x16x16xf32>
    %40 = vector.shape_cast %39 : vector<1x1x16x16xf32> to vector<16x16xf32>
    %41 = arith.addf %38, %40 : vector<16x16xf32>
    %c8_26 = arith.constant 8 : index
    %c1_27 = arith.constant 1 : index
    %42 = vector.load %arg6[%c8_26, %c1_27] : memref<24x18xf32, #tpu.memory_space<vmem>>, vector<16x16xf32>
    tpu.vector_store %arg6[%c8_26, %c1_27], %41 {strides = array<i32>} : memref<24x18xf32, #tpu.memory_space<vmem>>, vector<16x16xf32>,
    %c0_28 = arith.constant 0 : index
    %c0_29 = arith.constant 0 : index
    %43 = vector.load %arg6[%c0_28, %c0_29] : memref<24x18xf32, #tpu.memory_space<vmem>>, vector<24x18xf32>
    %44 = vector.extract_strided_slice %43 {offsets = [6, 0], sizes = [16, 18], strides = [1, 1]} : vector<24x18xf32> to vector<16x18xf32>
    %45 = vector.extract_strided_slice %43 {offsets = [7, 0], sizes = [16, 18], strides = [1, 1]} : vector<24x18xf32> to vector<16x18xf32>
    %46 = vector.extract_strided_slice %43 {offsets = [8, 0], sizes = [16, 18], strides = [1, 1]} : vector<24x18xf32> to vector<16x18xf32>
    %cst_30 = arith.constant 2.000000e+00 : f32
    %47 = vector.broadcast %cst_30 : f32 to vector<16x18xf32>
    %48 = arith.mulf %47, %45 : vector<16x18xf32>
    %49 = arith.addf %44, %48 : vector<16x18xf32>
    %50 = arith.addf %49, %46 : vector<16x18xf32>
    %51 = arith.subf %44, %46 : vector<16x18xf32>
    %52 = vector.extract_strided_slice %50 {offsets = [0, 0], sizes = [16, 16], strides = [1, 1]} : vector<16x18xf32> to vector<16x16xf32>
    %53 = vector.extract_strided_slice %50 {offsets = [0, 2], sizes = [16, 16], strides = [1, 1]} : vector<16x18xf32> to vector<16x16xf32>
    %54 = arith.subf %52, %53 : vector<16x16xf32>
    %55 = vector.extract_strided_slice %51 {offsets = [0, 0], sizes = [16, 16], strides = [1, 1]} : vector<16x18xf32> to vector<16x16xf32>
    %56 = vector.extract_strided_slice %51 {offsets = [0, 1], sizes = [16, 16], strides = [1, 1]} : vector<16x18xf32> to vector<16x16xf32>
    %cst_31 = arith.constant 2.000000e+00 : f32
    %57 = vector.broadcast %cst_31 : f32 to vector<16x16xf32>
    %58 = arith.mulf %57, %56 : vector<16x16xf32>
    %59 = arith.addf %55, %58 : vector<16x16xf32>
    %60 = vector.extract_strided_slice %51 {offsets = [0, 2], sizes = [16, 16], strides = [1, 1]} : vector<16x18xf32> to vector<16x16xf32>
    %61 = arith.addf %59, %60 : vector<16x16xf32>
    %62 = math.absf %54 : vector<16x16xf32>
    %63 = math.absf %61 : vector<16x16xf32>
    %64 = arith.addf %62, %63 : vector<16x16xf32>
    %65 = arith.subf %33, %64 : vector<16x16xf32>
    %66 = arith.mulf %65, %65 : vector<16x16xf32>
    %cst_32 = arith.constant 9.99999997E-7 : f32
    %67 = vector.broadcast %cst_32 : f32 to vector<16x16xf32>
    %68 = arith.addf %66, %67 : vector<16x16xf32>
    %69 = math.sqrt %68 : vector<16x16xf32>
    %70 = tpu.iota {dimensions = array<i32: 0>} : vector<8x16xi32>
    %c0_i32_33 = arith.constant 0 : i32
    %71 = vector.broadcast %c0_i32_33 : i32 to vector<8x16xi32>
    %72 = arith.cmpi eq, %70, %71 : vector<8x16xi32>
    %c0_i32_34 = arith.constant 0 : i32
    %73 = arith.cmpi eq, %arg1, %c0_i32_34 : i32
    %74 = vector.broadcast %73 : i1 to vector<8x16xi1>
    %75 = arith.andi %72, %74 : vector<8x16xi1>
    %76 = vector.extract_strided_slice %69 {offsets = [0, 0], sizes = [8, 16], strides = [1, 1]} : vector<16x16xf32> to vector<8x16xf32>
    %cst_35 = arith.constant 0.000000e+00 : f32
    %77 = vector.broadcast %cst_35 : f32 to vector<8x16xf32>
    %78 = arith.select %75, %77, %76 : vector<8x16xi1>, vector<8x16xf32>
    %79 = vector.extract_strided_slice %69 {offsets = [8, 0], sizes = [8, 16], strides = [1, 1]} : vector<16x16xf32> to vector<8x16xf32>
    %80 = arith.addf %78, %79 : vector<8x16xf32>
    %c0_36 = arith.constant 0 : index
    %c0_37 = arith.constant 0 : index
    %81 = vector.load %arg7[%c0_36, %c0_37] : memref<8x16xf32, #tpu.memory_space<vmem>>, vector<8x16xf32>
    %82 = arith.addf %81, %80 : vector<8x16xf32>
    %c0_38 = arith.constant 0 : index
    %c0_39 = arith.constant 0 : index
    %83 = vector.load %arg7[%c0_38, %c0_39] : memref<8x16xf32, #tpu.memory_space<vmem>>, vector<8x16xf32>
    tpu.vector_store %arg7[%c0_38, %c0_39], %82 {strides = array<i32>} : memref<8x16xf32, #tpu.memory_space<vmem>>, vector<8x16xf32>,
    %c0_i32_40 = arith.constant 0 : i32
    %84 = arith.cmpi eq, %arg1, %c0_i32_40 : i32
    %85 = arith.extui %84 : i1 to i32
    %c0_i32_41 = arith.constant 0 : i32
    %86 = arith.cmpi ne, %85, %c0_i32_41 : i32
    scf.if %86 {
      %c22 = arith.constant 22 : index
      %c0_42 = arith.constant 0 : index
      %87 = vector.load %arg5[%c22, %c0_42] : memref<24x18xf32, #tpu.memory_space<vmem>>, vector<1x18xf32>
      %c23 = arith.constant 23 : index
      %c0_43 = arith.constant 0 : index
      %88 = vector.load %arg5[%c23, %c0_43] : memref<24x18xf32, #tpu.memory_space<vmem>>, vector<1x18xf32>
      %cst_44 = arith.constant 2.000000e+00 : f32
      %89 = vector.broadcast %cst_44 : f32 to vector<1x18xf32>
      %90 = arith.mulf %89, %88 : vector<1x18xf32>
      %91 = arith.addf %87, %90 : vector<1x18xf32>
      %92 = vector.extract_strided_slice %91 {offsets = [0, 0], sizes = [1, 16], strides = [1, 1]} : vector<1x18xf32> to vector<1x16xf32>
      %93 = vector.extract_strided_slice %91 {offsets = [0, 2], sizes = [1, 16], strides = [1, 1]} : vector<1x18xf32> to vector<1x16xf32>
      %94 = arith.subf %92, %93 : vector<1x16xf32>
      %95 = vector.extract_strided_slice %87 {offsets = [0, 0], sizes = [1, 16], strides = [1, 1]} : vector<1x18xf32> to vector<1x16xf32>
      %96 = vector.extract_strided_slice %87 {offsets = [0, 1], sizes = [1, 16], strides = [1, 1]} : vector<1x18xf32> to vector<1x16xf32>
      %cst_45 = arith.constant 2.000000e+00 : f32
      %97 = vector.broadcast %cst_45 : f32 to vector<1x16xf32>
      %98 = arith.mulf %97, %96 : vector<1x16xf32>
      %99 = arith.addf %95, %98 : vector<1x16xf32>
      %100 = vector.extract_strided_slice %87 {offsets = [0, 2], sizes = [1, 16], strides = [1, 1]} : vector<1x18xf32> to vector<1x16xf32>
      %101 = arith.addf %99, %100 : vector<1x16xf32>
      %102 = math.absf %94 : vector<1x16xf32>
      %103 = math.absf %101 : vector<1x16xf32>
      %104 = arith.addf %102, %103 : vector<1x16xf32>
      %c22_46 = arith.constant 22 : index
      %c0_47 = arith.constant 0 : index
      %105 = vector.load %arg6[%c22_46, %c0_47] : memref<24x18xf32, #tpu.memory_space<vmem>>, vector<1x18xf32>
      %c23_48 = arith.constant 23 : index
      %c0_49 = arith.constant 0 : index
      %106 = vector.load %arg6[%c23_48, %c0_49] : memref<24x18xf32, #tpu.memory_space<vmem>>, vector<1x18xf32>
      %cst_50 = arith.constant 2.000000e+00 : f32
      %107 = vector.broadcast %cst_50 : f32 to vector<1x18xf32>
      %108 = arith.mulf %107, %106 : vector<1x18xf32>
      %109 = arith.addf %105, %108 : vector<1x18xf32>
      %110 = vector.extract_strided_slice %109 {offsets = [0, 0], sizes = [1, 16], strides = [1, 1]} : vector<1x18xf32> to vector<1x16xf32>
      %111 = vector.extract_strided_slice %109 {offsets = [0, 2], sizes = [1, 16], strides = [1, 1]} : vector<1x18xf32> to vector<1x16xf32>
      %112 = arith.subf %110, %111 : vector<1x16xf32>
      %113 = vector.extract_strided_slice %105 {offsets = [0, 0], sizes = [1, 16], strides = [1, 1]} : vector<1x18xf32> to vector<1x16xf32>
      %114 = vector.extract_strided_slice %105 {offsets = [0, 1], sizes = [1, 16], strides = [1, 1]} : vector<1x18xf32> to vector<1x16xf32>
      %cst_51 = arith.constant 2.000000e+00 : f32
      %115 = vector.broadcast %cst_51 : f32 to vector<1x16xf32>
      %116 = arith.mulf %115, %114 : vector<1x16xf32>
      %117 = arith.addf %113, %116 : vector<1x16xf32>
      %118 = vector.extract_strided_slice %105 {offsets = [0, 2], sizes = [1, 16], strides = [1, 1]} : vector<1x18xf32> to vector<1x16xf32>
      %119 = arith.addf %117, %118 : vector<1x16xf32>
      %120 = math.absf %112 : vector<1x16xf32>
      %121 = math.absf %119 : vector<1x16xf32>
      %122 = arith.addf %120, %121 : vector<1x16xf32>
      %123 = arith.subf %104, %122 : vector<1x16xf32>
      %124 = arith.mulf %123, %123 : vector<1x16xf32>
      %cst_52 = arith.constant 9.99999997E-7 : f32
      %125 = vector.broadcast %cst_52 : f32 to vector<1x16xf32>
      %126 = arith.addf %124, %125 : vector<1x16xf32>
      %127 = math.sqrt %126 : vector<1x16xf32>
      %c0_53 = arith.constant 0 : index
      %c0_54 = arith.constant 0 : index
      %128 = vector.load %arg7[%c0_53, %c0_54] : memref<8x16xf32, #tpu.memory_space<vmem>>, vector<1x16xf32>
      %129 = arith.addf %128, %127 : vector<1x16xf32>
      %c0_55 = arith.constant 0 : index
      %c0_56 = arith.constant 0 : index
      %130 = vector.load %arg7[%c0_55, %c0_56] : memref<8x16xf32, #tpu.memory_space<vmem>>, vector<1x16xf32>
      tpu.vector_store %arg7[%c0_55, %c0_56], %129 {strides = array<i32>} : memref<8x16xf32, #tpu.memory_space<vmem>>, vector<1x16xf32>,
      %c0_57 = arith.constant 0 : index
      %c0_58 = arith.constant 0 : index
      %131 = vector.load %arg7[%c0_57, %c0_58] : memref<8x16xf32, #tpu.memory_space<vmem>>, vector<8x16xf32>
      %c0_59 = arith.constant 0 : index
      %c0_60 = arith.constant 0 : index
      %c0_61 = arith.constant 0 : index
      %132 = vector.load %arg4[%c0_59, %c0_60, %c0_61] : memref<1x8x16xf32, #tpu.memory_space<vmem>>, vector<1x8x16xf32>
      %133 = vector.shape_cast %132 : vector<1x8x16xf32> to vector<8x16xf32>
      %134 = vector.shape_cast %131 : vector<8x16xf32> to vector<1x8x16xf32>
      tpu.vector_store %arg4[%c0_59, %c0_60, %c0_61], %134 {strides = array<i32>} : memref<1x8x16xf32, #tpu.memory_space<vmem>>, vector<1x8x16xf32>,
    } else {
    }
    return
  }
  func.func @transform_0(%arg0: i32, %arg1: i32) -> (i32, i32, i32, i32) {
    %c0_i32 = arith.constant 0 : i32
    %c0_i32_0 = arith.constant 0 : i32
    %c0_i32_1 = arith.constant 0 : i32
    return %arg0, %c0_i32, %arg1, %c0_i32_0 : i32, i32, i32, i32
  }
  func.func @transform_1(%arg0: i32, %arg1: i32) -> (i32, i32, i32, i32) {
    %c0_i32 = arith.constant 0 : i32
    %c0_i32_0 = arith.constant 0 : i32
    %c0_i32_1 = arith.constant 0 : i32
    return %arg0, %c0_i32, %arg1, %c0_i32_0 : i32, i32, i32, i32
  }
  func.func @transform_2(%arg0: i32, %arg1: i32) -> (i32, i32, i32) {
    %c0_i32 = arith.constant 0 : i32
    %c0_i32_0 = arith.constant 0 : i32
    %c0_i32_1 = arith.constant 0 : i32
    return %arg0, %c0_i32, %c0_i32_0 : i32, i32, i32
  }
}

</mosaic_0001>

<llo_original>
// kernel: tpu_custom_call.1
$region0: #{tpu_custom_call.1}
  #allocation0 [shape = 'u32[]', space=smem, size = 0x4, offset = 0x4, fixed_abs, tag = 'smem constant byte address 0x4 - core index']
  #allocation1 [shape = 'u32[144,128]{1,0:T(1,128)}', space=vmem, size = 0x12000, scoped, tag = 'internal scratch']
  #allocation2 [shape = 'f32[24,18]{1,0:T(8,128)}', space=vmem, size = 0x3000, scoped, tag = 'scratch operand']
  #allocation3 [shape = 'f32[24,18]{1,0:T(8,128)}', space=vmem, size = 0x3000, scoped, tag = 'scratch operand']
  #allocation4 [shape = 'f32[8,16]{1,0:T(8,128)}', space=vmem, size = 0x1000, scoped, tag = 'scratch operand']
  %s0 = inlined_call_operand.hbm [shape: f32[2,3,16,16], index: 0, kind: input, shape index: {}]
  %s1 = inlined_call_operand.hbm [shape: f32[2,3,16,16], index: 1, kind: input, shape index: {}]
  %s2 = inlined_call_operand.hbm [shape: f32[2,8,16], index: 2, kind: output, shape index: {}]
  %s3 = sld [smem:[#allocation0]]
  $region57: #{tpu_custom_call.1} parent=0
    _
  %s5 = ssub.s32 1, %s3
  %s6 = scalar_select 0, %s5, %s3
  $region1: #{tpu_custom_call.1} parent=0
    #allocation5 [shape = 'u8[49152]{0}', space=vmem, size = 0xc000, scoped, tag = 'input window, operand 0']
    #allocation6 [shape = 's32[2]{0}', space=sflag, size = 0x8, scoped, tag = 'scoped memory for tpu_custom_call.1']
    #allocation7 [shape = 's32[2]{0}', space=sflag, size = 0x8, scoped, tag = 'scoped memory for tpu_custom_call.1']
    #allocation8 [shape = 'u8[49152]{0}', space=vmem, size = 0xc000, scoped, tag = 'input window, operand 1']
    #allocation9 [shape = 's32[2]{0}', space=sflag, size = 0x8, scoped, tag = 'scoped memory for tpu_custom_call.1']
    #allocation10 [shape = 'u8[8192]{0}', space=vmem, size = 0x2000, scoped, tag = 'output window, operand 0']
    %7 = vsyncpa [#allocation6], 0
    %s8 = scalar_lea.sflag [#allocation6], 1
    %9 = vsyncpa %s8, 0
    %10 = vsyncpa [#allocation9], 0
    %s11 = scalar_lea.sflag [#allocation9], 1
    %12 = vsyncpa %s11, 0
    %13 = vsyncpa [#allocation7], 0
    %s14 = scalar_lea.sflag [#allocation7], 1
    %15 = vsyncpa %s14, 0
    loop: start=0, step=1, limit=4
    $region2: #{tpu_custom_call.1} parent=1 // loop_pre_header
      _
    $region3: #{tpu_custom_call.1} parent=1 // loop_header
      %s17 = sphi 0, %s21
      %p18 = scmp.ge.s32.totalorder %s17, 4
      %s24 = sphi 0, %s36
      %s25 = sphi 0, %s32
      %s26 = sphi 0, %s24
      %s27 = sphi 0, %s25
      %s28 = sphi 0, %s26
      %s29 = sphi 0, %s27
      %s41 = sphi 0, %s43
      %s44 = sphi 0, %s41
      %s45 = sphi 0, %s44
      %s61 = sphi 0, %s45
      %s69 = sphi 0, %s71
      %s72 = sphi 0, %s69
      %s73 = sphi 0, %s72
      %s89 = sphi 0, %s73
      %s95 = sphi 0, %s97
      %s98 = sphi 0, %s95
      %s99 = sphi 0, %s98
      %s115 = sphi 0, %s99
    $region4: #{tpu_custom_call.1} parent=1 // loop_header_branch
      %20 = sbr.rel (%p18) target = $region8
    $region5: #{tpu_custom_call.1} parent=1 // loop_body
      %s22 = ssub.s32 %s17, 1
      %s23 = ssub.s32 %s17, 2
      %s30 = sadd.s32 1, %s25
      %p31 = scmp.ge.s32.totalorder %s30, 1
      %s32 = scalar_select %p31, 0, %s30
      %s33 = sadd.s32 1, %s24
      %s34 = scalar_select %p31, %s33, %s24
      %p35 = scmp.ge.s32.totalorder %s34, 2
      %s36 = scalar_select %p35, 0, %s34
      %s37 = ssub.s32 %s24, %s36
      %s38 = ssub.s32 %s25, %s32
      %s39 = sor.u32 %s37, %s38
      %p40 = scmp.eq.s32.totalorder %s39, 0
      %s42 = sadd.s32 %s41, 1
      %s43 = scalar_select %p40, %s41, %s42
      %p46 = pneg %p40
      %p47 = scmp.eq.s32.totalorder %s17, 1
      %p48 = por %p46, %p47
      %p49 = scmp.ne.s32.totalorder %s41, %s44
      %p50 = scmp.eq.s32.totalorder %s17, 0
      %p51 = por %p49, %p50
      %p52 = scmp.ne.s32.totalorder %s41, %s44
      %p53 = scmp.eq.s32.totalorder %s22, 1
      %p54 = por %p52, %p53
      %p55 = scmp.ne.s32.totalorder %s44, %s45
      %p56 = scmp.eq.s32.totalorder %s22, 0
      %p57 = por %p55, %p56
      %p58 = scmp.ne.s32.totalorder %s44, %s45
      %p59 = scmp.eq.s32.totalorder %s23, 1
      %p60 = por %p58, %p59
      %p62 = scmp.ne.s32.totalorder %s45, %s61
      %p63 = scmp.eq.s32.totalorder %s23, 0
      %p64 = por %p62, %p63
      %s65 = ssub.s32 %s24, %s36
      %s66 = ssub.s32 %s25, %s32
      %s67 = sor.u32 %s65, %s66
      %p68 = scmp.eq.s32.totalorder %s67, 0
      %s70 = sadd.s32 %s69, 1
      %s71 = scalar_select %p68, %s69, %s70
      %p74 = pneg %p68
      %p75 = scmp.eq.s32.totalorder %s17, 1
      %p76 = por %p74, %p75
      %p77 = scmp.ne.s32.totalorder %s69, %s72
      %p78 = scmp.eq.s32.totalorder %s17, 0
      %p79 = por %p77, %p78
      %p80 = scmp.ne.s32.totalorder %s69, %s72
      %p81 = scmp.eq.s32.totalorder %s22, 1
      %p82 = por %p80, %p81
      %p83 = scmp.ne.s32.totalorder %s72, %s73
      %p84 = scmp.eq.s32.totalorder %s22, 0
      %p85 = por %p83, %p84
      %p86 = scmp.ne.s32.totalorder %s72, %s73
      %p87 = scmp.eq.s32.totalorder %s23, 1
      %p88 = por %p86, %p87
      %p90 = scmp.ne.s32.totalorder %s73, %s89
      %p91 = scmp.eq.s32.totalorder %s23, 0
      %p92 = por %p90, %p91
      %s93 = ssub.s32 %s24, %s36
      %p94 = scmp.eq.s32.totalorder %s93, 0
      %s96 = sadd.s32 %s95, 1
      %s97 = scalar_select %p94, %s95, %s96
      %p100 = pneg %p94
      %p101 = scmp.eq.s32.totalorder %s17, 1
      %p102 = por %p100, %p101
      %p103 = scmp.ne.s32.totalorder %s95, %s98
      %p104 = scmp.eq.s32.totalorder %s17, 0
      %p105 = por %p103, %p104
      %p106 = scmp.ne.s32.totalorder %s95, %s98
      %p107 = scmp.eq.s32.totalorder %s22, 1
      %p108 = por %p106, %p107
      %p109 = scmp.ne.s32.totalorder %s98, %s99
      %p110 = scmp.eq.s32.totalorder %s22, 0
      %p111 = por %p109, %p110
      %p112 = scmp.ne.s32.totalorder %s98, %s99
      %p113 = scmp.eq.s32.totalorder %s23, 1
      %p114 = por %p112, %p113
      %p116 = scmp.ne.s32.totalorder %s99, %s115
      %p117 = scmp.eq.s32.totalorder %s23, 0
      %p118 = por %p116, %p117
      %p119 = scmp.le.s32.totalorder 1, %s17
      %p120 = scmp.lt.s32.totalorder %s17, 3
      %p121 = pnand %p119, %p120
      %p122 = pneg %p121
      // Predicated region
      $region9: #{tpu_custom_call.1} parent=5 // pred_check
        _
      $region10: #{tpu_custom_call.1} parent=5 // pred_check_branch
        %124 = sbr.rel (%p121) target = $region12
      $region11: #{tpu_custom_call.1} parent=5 // pred_region
        %s125 = ssub.s32 %s17, 1
      $region12: #{tpu_custom_call.1} parent=5 // pred_fallthru
        _
      %p126 = scmp.lt.s32.totalorder %s17, 2
      // Predicated region
      $region13: #{tpu_custom_call.1} parent=5 // pred_check
        %p127 = pneg %p126
      $region14: #{tpu_custom_call.1} parent=5 // pred_check_branch
        %129 = sbr.rel (%p127) target = $region16
      $region15: #{tpu_custom_call.1} parent=5 // pred_region
        // Predicated region
        $region17: #{tpu_custom_call.1} parent=15 // pred_check
          %p130 = pneg %p51
        $region18: #{tpu_custom_call.1} parent=15 // pred_check_branch
          %132 = sbr.rel (%p130) target = $region20
        $region19: #{tpu_custom_call.1} parent=15 // pred_region
          %s133 = sand.u32 %s41, 1
          %s134 = scalar_lea.sflag [#allocation6], %s133
          %s135 = sand.u32 %s41, 1
          %s136 = smul.addr %s135, 48
          %s137 = scalar_lea.vmem [#allocation5], %s136
          %s138 = smul.u32 2, %s25
          %s140 = ssub.s32 768, 768
          %141 = vsyncadd %s134, %s140
          %s142 = smul.addr %s24, 6
          %s143 = sadd.s32 %s138, %s142
          %s144 = smul.addr %s143, 128
          %s145 = scalar_lea.hbm %s0, %s144
          %s146 = sshll.u32 %s137, 4
          %s147 = int_to_ptr.vmem [resolvable:$true] %s146
          %152 = dma.hbm_to_vmem [thread:$0]  %s145, 768, %s147, %s134, 128, 128, 8
        $region20: #{tpu_custom_call.1} parent=15 // pred_fallthru
          _
        // Predicated region
        $region21: #{tpu_custom_call.1} parent=15 // pred_check
          %p153 = pneg %p79
        $region22: #{tpu_custom_call.1} parent=15 // pred_check_branch
          %155 = sbr.rel (%p153) target = $region24
        $region23: #{tpu_custom_call.1} parent=15 // pred_region
          %s156 = sand.u32 %s69, 1
          %s157 = scalar_lea.sflag [#allocation9], %s156
          %s158 = sand.u32 %s69, 1
          %s159 = smul.addr %s158, 48
          %s160 = scalar_lea.vmem [#allocation8], %s159
          %s161 = smul.u32 2, %s25
          %s163 = ssub.s32 768, 768
          %164 = vsyncadd %s157, %s163
          %s165 = smul.addr %s24, 6
          %s166 = sadd.s32 %s161, %s165
          %s167 = smul.addr %s166, 128
          %s168 = scalar_lea.hbm %s1, %s167
          %s169 = sshll.u32 %s160, 4
          %s170 = int_to_ptr.vmem [resolvable:$true] %s169
          %175 = dma.hbm_to_vmem [thread:$0]  %s168, 768, %s170, %s157, 128, 128, 8
        $region24: #{tpu_custom_call.1} parent=15 // pred_fallthru
          _
      $region16: #{tpu_custom_call.1} parent=5 // pred_fallthru
        _
      %p176 = scmp.le.s32.totalorder 1, %s17
      %p177 = scmp.lt.s32.totalorder %s17, 3
      %p178 = pnand %p176, %p177
      %p179 = pneg %p178
      // Predicated region
      $region25: #{tpu_custom_call.1} parent=5 // pred_check
        _
      $region26: #{tpu_custom_call.1} parent=5 // pred_check_branch
        %181 = sbr.rel (%p178) target = $region28
      $region27: #{tpu_custom_call.1} parent=5 // pred_region
        %s182 = ssub.s32 %s17, 1
        %s183 = sand.u32 %s44, 1
        %s184 = scalar_lea.sflag [#allocation6], %s183
        %s185 = sand.u32 %s44, 1
        %s186 = smul.addr %s185, 48
        %s187 = scalar_lea.vmem [#allocation5], %s186
        // Predicated region
        $region29: #{tpu_custom_call.1} parent=27 // pred_check
          %p188 = pneg %p57
        $region30: #{tpu_custom_call.1} parent=27 // pred_check_branch
          %190 = sbr.rel (%p188) target = $region32
        $region31: #{tpu_custom_call.1} parent=27 // pred_region
          %191 = dma.done %s184, 768
        $region32: #{tpu_custom_call.1} parent=27 // pred_fallthru
          _
        %s192 = sand.u32 %s72, 1
        %s193 = scalar_lea.sflag [#allocation9], %s192
        %s194 = sand.u32 %s72, 1
        %s195 = smul.addr %s194, 48
        %s196 = scalar_lea.vmem [#allocation8], %s195
        // Predicated region
        $region33: #{tpu_custom_call.1} parent=27 // pred_check
          %p197 = pneg %p85
        $region34: #{tpu_custom_call.1} parent=27 // pred_check_branch
          %199 = sbr.rel (%p197) target = $region36
        $region35: #{tpu_custom_call.1} parent=27 // pred_region
          %200 = dma.done %s193, 768
        $region36: #{tpu_custom_call.1} parent=27 // pred_fallthru
          _
        %s201 = sand.u32 %s44, 1
        %s202 = scalar_lea.sflag [#allocation6], %s201
        %s203 = sand.u32 %s44, 1
        %s204 = smul.addr %s203, 48
        %s205 = scalar_lea.vmem [#allocation5], %s204
        %p206 = pneg %p57
        %p207 = pneg %p54
        %s208 = sand.u32 %s72, 1
        %s209 = scalar_lea.sflag [#allocation9], %s208
        %s210 = sand.u32 %s72, 1
        %s211 = smul.addr %s210, 48
        %s212 = scalar_lea.vmem [#allocation8], %s211
        %p213 = pneg %p85
        %p214 = pneg %p82
        %p215 = pneg %p111
        %p216 = pneg %p108
        %s217 = sand.u32 %s98, 1
        %s218 = scalar_lea.sflag [#allocation7], %s217
        %s219 = sand.u32 %s98, 1
        %s220 = smul.addr %s219, 8
        %s221 = scalar_lea.vmem [#allocation10], %s220
        %s222 = smul.u32 2, %s27
        %s223 = smul.u32 2, %s27
        %p224 = scmp.eq.s32.totalorder %s27, 0
        // Predicated region
        $region37: #{tpu_custom_call.1} parent=27 // pred_check
          %p225 = pneg %p224
        $region38: #{tpu_custom_call.1} parent=27 // pred_check_branch
          %227 = sbr.rel (%p225) target = $region40
        $region39: #{tpu_custom_call.1} parent=27 // pred_region
          %vm228 = vcmask 146432
          %229 = vst.msk [vmem:[#allocation2] sm:$0xff] %vm228, 0.0
          %230 = vst.msk [vmem:[#allocation3] sm:$0xff] %vm228, 0.0
          %vm231 = vcmask 7168
          %232 = vst.msk [vmem:[#allocation2] sm:$0xff] %vm231, 0.0
          %233 = vst.msk [vmem:[#allocation2 + $0x8] sm:$0xff] %vm231, 0.0
          %234 = vst.msk [vmem:[#allocation2 + $0x10] sm:$0xff] %vm231, 0.0
          %235 = vst.msk [vmem:[#allocation3] sm:$0xff] %vm231, 0.0
          %236 = vst.msk [vmem:[#allocation3 + $0x8] sm:$0xff] %vm231, 0.0
          %237 = vst.msk [vmem:[#allocation3 + $0x10] sm:$0xff] %vm231, 0.0
          %vm238 = vcmask 146568
          %239 = vst.msk [vmem:[#allocation2] sm:$0xff] %vm238, 0.0
          %240 = vst.msk [vmem:[#allocation2 + $0x8] sm:$0xff] %vm238, 0.0
          %241 = vst.msk [vmem:[#allocation2 + $0x10] sm:$0xff] %vm238, 0.0
          %242 = vst.msk [vmem:[#allocation3] sm:$0xff] %vm238, 0.0
          %243 = vst.msk [vmem:[#allocation3 + $0x8] sm:$0xff] %vm238, 0.0
          %244 = vst.msk [vmem:[#allocation3 + $0x10] sm:$0xff] %vm238, 0.0
          %vm245 = vcmask 130048
          %246 = vst.msk [vmem:[#allocation4] sm:$0xff] %vm245, 0.0
        $region40: #{tpu_custom_call.1} parent=27 // pred_fallthru
          _
        %v247 = vld [vmem:[%s187] sm:$0xff]
        %v248 = vld [vmem:[%s187 + $0x8] sm:$0xff]
        %s249 = scalar_lea.vmem %s187, 16 [#allocation5]
        %v250 = vld [vmem:[%s249] sm:$0xff]
        %v251 = vld [vmem:[%s249 + $0x8] sm:$0xff]
        %v252 = vadd.f32 %v247, %v250
        %v253 = vadd.f32 %v248, %v251
        %s254 = scalar_lea.vmem %s187, 32 [#allocation5]
        %v255 = vld [vmem:[%s254] sm:$0xff]
        %v256 = vld [vmem:[%s254 + $0x8] sm:$0xff]
        %v257 = vadd.f32 %v252, %v255
        %v258 = vadd.f32 %v253, %v256
        %261 = vrot.lane.b32.xlu0 %v257, 1
        %v262 = vpop.permute.xlu0 %261
        %263 = vrot.lane.b32.xlu0 %v258, 1
        %v264 = vpop.permute.xlu0 %263
        %vm267 = vcmask 138248
        %268 = vst.msk [vmem:[#allocation2 + $0x8] sm:$0xff] %vm267, %v262
        %269 = vst.msk [vmem:[#allocation2 + $0x10] sm:$0xff] %vm267, %v264
        %v270 = vld [vmem:[#allocation2] sm:$0xff]
        %v271 = vld [vmem:[#allocation2 + $0x8] sm:$0xff]
        %v272 = vld [vmem:[#allocation2 + $0x10] sm:$0xff]
        %v273 = vmul.f32 %v270, 2.0
        %v274 = vmul.f32 %v271, 2.0
        %v275 = vmul.f32 %v272, 2.0
        %vm279 = vcmask 1046528
        %v280 = vrot.slane %v273, 1
        %v281 = vrot.slane %v274, 1
        %v282 = vsel %vm279, %v280, %v281
        %v283 = vrot.slane %v275, 1
        %v284 = vsel %vm279, %v281, %v283
        %v288 = vadd.f32 %v270, %v282
        %v289 = vadd.f32 %v271, %v284
        %v290 = vadd.f32 %v272, %v283
        %vm293 = vcmask 1045504
        %v294 = vrot.slane %v271, 2
        %v295 = vrot.slane %v272, 2
        %v296 = vsel %vm293, %v294, %v295
        %v300 = vadd.f32 %v288, %v294
        %v301 = vadd.f32 %v289, %v296
        %v302 = vadd.f32 %v290, %v295
        %v303 = vsub.f32 %v270, %v294
        %v304 = vsub.f32 %v271, %v296
        %v305 = vsub.f32 %v272, %v295
        %309 = vrot.lane.b32.xlu0 %v300, 126
        %v310 = vpop.permute.xlu0 %309
        %311 = vrot.lane.b32.xlu0 %v301, 126
        %v312 = vpop.permute.xlu0 %311
        %313 = vrot.lane.b32.xlu0 %v302, 126
        %v314 = vpop.permute.xlu0 %313
        %v318 = vsub.f32 %v300, %v310
        %v319 = vsub.f32 %v301, %v312
        %v320 = vsub.f32 %v302, %v314
        %v321 = vmul.f32 %v303, 2.0
        %v322 = vmul.f32 %v304, 2.0
        %v323 = vmul.f32 %v305, 2.0
        %327 = vrot.lane.b32.xlu0 %v321, 127
        %v328 = vpop.permute.xlu0 %327
        %329 = vrot.lane.b32.xlu0 %v322, 127
        %v330 = vpop.permute.xlu0 %329
        %331 = vrot.lane.b32.xlu0 %v323, 127
        %v332 = vpop.permute.xlu0 %331
        %v336 = vadd.f32 %v303, %v328
        %v337 = vadd.f32 %v304, %v330
        %v338 = vadd.f32 %v305, %v332
        %342 = vrot.lane.b32.xlu0 %v303, 126
        %v343 = vpop.permute.xlu0 %342
        %344 = vrot.lane.b32.xlu0 %v304, 126
        %v345 = vpop.permute.xlu0 %344
        %346 = vrot.lane.b32.xlu0 %v305, 126
        %v347 = vpop.permute.xlu0 %346
        %v351 = vadd.f32 %v336, %v343
        %v352 = vadd.f32 %v337, %v345
        %v353 = vadd.f32 %v338, %v347
        %v354 = vand.u32 2147483647, %v318
        %v355 = vand.u32 2147483647, %v319
        %v356 = vand.u32 2147483647, %v320
        %v357 = vand.u32 2147483647, %v351
        %v358 = vand.u32 2147483647, %v352
        %v359 = vand.u32 2147483647, %v353
        %v360 = vadd.f32 %v354, %v357
        %v361 = vadd.f32 %v355, %v358
        %v362 = vadd.f32 %v356, %v359
        %v363 = vld [vmem:[%s196] sm:$0xff]
        %v364 = vld [vmem:[%s196 + $0x8] sm:$0xff]
        %s365 = scalar_lea.vmem %s196, 16 [#allocation8]
        %v366 = vld [vmem:[%s365] sm:$0xff]
        %v367 = vld [vmem:[%s365 + $0x8] sm:$0xff]
        %v368 = vadd.f32 %v363, %v366
        %v369 = vadd.f32 %v364, %v367
        %s370 = scalar_lea.vmem %s196, 32 [#allocation8]
        %v371 = vld [vmem:[%s370] sm:$0xff]
        %v372 = vld [vmem:[%s370 + $0x8] sm:$0xff]
        %v373 = vadd.f32 %v368, %v371
        %v374 = vadd.f32 %v369, %v372
        %377 = vrot.lane.b32.xlu0 %v373, 1
        %v378 = vpop.permute.xlu0 %377
        %379 = vrot.lane.b32.xlu0 %v374, 1
        %v380 = vpop.permute.xlu0 %379
        %383 = vst.msk [vmem:[#allocation3 + $0x8] sm:$0xff] %vm267, %v378
        %384 = vst.msk [vmem:[#allocation3 + $0x10] sm:$0xff] %vm267, %v380
        %v385 = vld [vmem:[#allocation3] sm:$0xff]
        %v386 = vld [vmem:[#allocation3 + $0x8] sm:$0xff]
        %v387 = vld [vmem:[#allocation3 + $0x10] sm:$0xff]
        %v388 = vmul.f32 %v385, 2.0
        %v389 = vmul.f32 %v386, 2.0
        %v390 = vmul.f32 %v387, 2.0
        %v394 = vrot.slane %v388, 1
        %v395 = vrot.slane %v389, 1
        %v396 = vsel %vm279, %v394, %v395
        %v397 = vrot.slane %v390, 1
        %v398 = vsel %vm279, %v395, %v397
        %v402 = vadd.f32 %v385, %v396
        %v403 = vadd.f32 %v386, %v398
        %v404 = vadd.f32 %v387, %v397
        %v407 = vrot.slane %v386, 2
        %v408 = vrot.slane %v387, 2
        %v409 = vsel %vm293, %v407, %v408
        %v413 = vadd.f32 %v402, %v407
        %v414 = vadd.f32 %v403, %v409
        %v415 = vadd.f32 %v404, %v408
        %v416 = vsub.f32 %v385, %v407
        %v417 = vsub.f32 %v386, %v409
        %v418 = vsub.f32 %v387, %v408
        %422 = vrot.lane.b32.xlu0 %v413, 126
        %v423 = vpop.permute.xlu0 %422
        %424 = vrot.lane.b32.xlu0 %v414, 126
        %v425 = vpop.permute.xlu0 %424
        %426 = vrot.lane.b32.xlu0 %v415, 126
        %v427 = vpop.permute.xlu0 %426
        %v431 = vsub.f32 %v413, %v423
        %v432 = vsub.f32 %v414, %v425
        %v433 = vsub.f32 %v415, %v427
        %v434 = vmul.f32 %v416, 2.0
        %v435 = vmul.f32 %v417, 2.0
        %v436 = vmul.f32 %v418, 2.0
        %440 = vrot.lane.b32.xlu0 %v434, 127
        %v441 = vpop.permute.xlu0 %440
        %442 = vrot.lane.b32.xlu0 %v435, 127
        %v443 = vpop.permute.xlu0 %442
        %444 = vrot.lane.b32.xlu0 %v436, 127
        %v445 = vpop.permute.xlu0 %444
        %v449 = vadd.f32 %v416, %v441
        %v450 = vadd.f32 %v417, %v443
        %v451 = vadd.f32 %v418, %v445
        %455 = vrot.lane.b32.xlu0 %v416, 126
        %v456 = vpop.permute.xlu0 %455
        %457 = vrot.lane.b32.xlu0 %v417, 126
        %v458 = vpop.permute.xlu0 %457
        %459 = vrot.lane.b32.xlu0 %v418, 126
        %v460 = vpop.permute.xlu0 %459
        %v464 = vadd.f32 %v449, %v456
        %v465 = vadd.f32 %v450, %v458
        %v466 = vadd.f32 %v451, %v460
        %v467 = vand.u32 2147483647, %v431
        %v468 = vand.u32 2147483647, %v432
        %v469 = vand.u32 2147483647, %v433
        %v470 = vand.u32 2147483647, %v464
        %v471 = vand.u32 2147483647, %v465
        %v472 = vand.u32 2147483647, %v466
        %v473 = vadd.f32 %v467, %v470
        %v474 = vadd.f32 %v468, %v471
        %v475 = vadd.f32 %v469, %v472
        %v476 = vsub.f32 %v360, %v473
        %v477 = vsub.f32 %v361, %v474
        %v478 = vsub.f32 %v362, %v475
        %v479 = vmul.f32 %v476, %v476
        %v480 = vmul.f32 %v477, %v477
        %v481 = vmul.f32 %v478, %v478
        %v482 = vadd.f32 %v479, 1e-06
        %v483 = vadd.f32 %v480, 1e-06
        %v484 = vadd.f32 %v481, 1e-06
        %v485 = vrsqrt.pop %v482
        %v486 = vmul.f32 %v482, %v485
        %vm487 = vcmp.eq.f32.partialorder %v482, inf
        %v488 = vsel %vm487, %v482, %v486
        %vm489 = vcmp.eq.f32.partialorder %v482, 0.0
        %v490 = vand.u32 %v482, 2147483648
        %v491 = vsel %vm489, %v490, %v488
        %v492 = vrsqrt.pop %v483
        %v493 = vmul.f32 %v483, %v492
        %vm494 = vcmp.eq.f32.partialorder %v483, inf
        %v495 = vsel %vm494, %v483, %v493
        %vm496 = vcmp.eq.f32.partialorder %v483, 0.0
        %v497 = vand.u32 %v483, 2147483648
        %v498 = vsel %vm496, %v497, %v495
        %v499 = vrsqrt.pop %v484
        %v500 = vmul.f32 %v484, %v499
        %vm501 = vcmp.eq.f32.partialorder %v484, inf
        %v502 = vsel %vm501, %v484, %v500
        %vm503 = vcmp.eq.f32.partialorder %v484, 0.0
        %v504 = vand.u32 %v484, 2147483648
        %v505 = vsel %vm503, %v504, %v502
        %v506 = vlaneseq
        %v507 = vshrl.u32 %v506, 7
        %vm508 = vcmp.eq.s32.totalorder %v507, 0
        %s509 = scalar_select %p224, 1, 0
        %v510 = vstv %s509
        %vm511 = vcmp.eq.s32.totalorder %v510, 1
        %vm512 = vmand %vm508, %vm511
        %vm515 = vcmask 1041408
        %v516 = vrot.slane %v491, 6
        %v517 = vrot.slane %v498, 6
        %v518 = vsel %vm515, %v516, %v517
        %v520 = vsel %vm512, 0.0, %v518
        %v522 = vrot.slane %v505, 6
        %v523 = vsel %vm515, %v517, %v522
        %v525 = vadd.f32 %v520, %v523
        %v526 = vld [vmem:[#allocation4] sm:$0xff]
        %v527 = vadd.f32 %v526, %v525
        %vm528 = vcmask 130048
        %529 = vst.msk [vmem:[#allocation4] sm:$0xff] %vm528, %v527
        // Predicated region
        $region41: #{tpu_custom_call.1} parent=27 // pred_check
          %p530 = pneg %p224
        $region42: #{tpu_custom_call.1} parent=27 // pred_check_branch
          %532 = sbr.rel (%p530) target = $region44
        $region43: #{tpu_custom_call.1} parent=27 // pred_region
          %v533 = vld [vmem:[#allocation2 + $0x16] sm:$0x1]
          %v534 = vld [vmem:[#allocation2 + $0x17] sm:$0x1]
          %v535 = vmul.f32 %v534, 2.0
          %v536 = vadd.f32 %v533, %v535
          %538 = vrot.lane.b32.xlu0 %v536, 126
          %v539 = vpop.permute.xlu0 %538
          %v541 = vsub.f32 %v536, %v539
          %v542 = vmul.f32 %v533, 2.0
          %544 = vrot.lane.b32.xlu0 %v542, 127
          %v545 = vpop.permute.xlu0 %544
          %v547 = vadd.f32 %v533, %v545
          %549 = vrot.lane.b32.xlu0 %v533, 126
          %v550 = vpop.permute.xlu0 %549
          %v552 = vadd.f32 %v547, %v550
          %v553 = vand.u32 2147483647, %v541
          %v554 = vand.u32 2147483647, %v552
          %v555 = vadd.f32 %v553, %v554
          %v556 = vld [vmem:[#allocation3 + $0x16] sm:$0x1]
          %v557 = vld [vmem:[#allocation3 + $0x17] sm:$0x1]
          %v558 = vmul.f32 %v557, 2.0
          %v559 = vadd.f32 %v556, %v558
          %561 = vrot.lane.b32.xlu0 %v559, 126
          %v562 = vpop.permute.xlu0 %561
          %v564 = vsub.f32 %v559, %v562
          %v565 = vmul.f32 %v556, 2.0
          %567 = vrot.lane.b32.xlu0 %v565, 127
          %v568 = vpop.permute.xlu0 %567
          %v570 = vadd.f32 %v556, %v568
          %572 = vrot.lane.b32.xlu0 %v556, 126
          %v573 = vpop.permute.xlu0 %572
          %v575 = vadd.f32 %v570, %v573
          %v576 = vand.u32 2147483647, %v564
          %v577 = vand.u32 2147483647, %v575
          %v578 = vadd.f32 %v576, %v577
          %v579 = vsub.f32 %v555, %v578
          %v580 = vmul.f32 %v579, %v579
          %v581 = vadd.f32 %v580, 1e-06
          %v582 = vrsqrt.pop %v581
          %v583 = vmul.f32 %v581, %v582
          %vm584 = vcmp.eq.f32.partialorder %v581, inf
          %v585 = vsel %vm584, %v581, %v583
          %vm586 = vcmp.eq.f32.partialorder %v581, 0.0
          %v587 = vand.u32 %v581, 2147483648
          %v588 = vsel %vm586, %v587, %v585
          %v589 = vld [vmem:[#allocation4] sm:$0x1]
          %v590 = vadd.f32 %v589, %v588
          %vm591 = vcmask 122880
          %592 = vst.msk [vmem:[#allocation4] sm:$0x1] %vm591, %v590
          %v593 = vld [vmem:[#allocation4] sm:$0xff]
          %594 = vst.msk [vmem:[%s221] sm:$0xff] %vm528, %v593
        $region44: #{tpu_custom_call.1} parent=27 // pred_fallthru
          _
        %s595 = sand.u32 %s98, 1
        %s596 = scalar_lea.sflag [#allocation7], %s595
        %s597 = sand.u32 %s98, 1
        %s598 = smul.addr %s597, 8
        %s599 = scalar_lea.vmem [#allocation10], %s598
        // Predicated region
        $region45: #{tpu_custom_call.1} parent=27 // pred_check
          %p600 = pneg %p108
        $region46: #{tpu_custom_call.1} parent=27 // pred_check_branch
          %602 = sbr.rel (%p600) target = $region48
        $region47: #{tpu_custom_call.1} parent=27 // pred_region
          %s604 = ssub.s32 128, 128
          %605 = vsyncadd %s596, %s604
          %s606 = smul.addr %s26, 128
          %s607 = scalar_lea.hbm %s2, %s606
          %s609 = sshll.u32 %s599, 4
          %s610 = int_to_ptr.vmem [resolvable:$true] %s609
          %612 = dma.vmem_to_hbm [thread:$0]  %s610, 128, %s607, %s596
        $region48: #{tpu_custom_call.1} parent=27 // pred_fallthru
          _
      $region28: #{tpu_custom_call.1} parent=5 // pred_fallthru
        _
      %p613 = scmp.le.s32.totalorder 2, %s17
      // Predicated region
      $region49: #{tpu_custom_call.1} parent=5 // pred_check
        %p614 = pneg %p613
      $region50: #{tpu_custom_call.1} parent=5 // pred_check_branch
        %616 = sbr.rel (%p614) target = $region52
      $region51: #{tpu_custom_call.1} parent=5 // pred_region
        %s617 = ssub.s32 %s17, 2
        // Predicated region
        $region53: #{tpu_custom_call.1} parent=51 // pred_check
          %p618 = pneg %p114
        $region54: #{tpu_custom_call.1} parent=51 // pred_check_branch
          %620 = sbr.rel (%p618) target = $region56
        $region55: #{tpu_custom_call.1} parent=51 // pred_region
          %s621 = sand.u32 %s99, 1
          %s622 = scalar_lea.sflag [#allocation7], %s621
          %s623 = sand.u32 %s99, 1
          %s624 = smul.addr %s623, 8
          %s625 = scalar_lea.vmem [#allocation10], %s624
          %626 = dma.done %s622, 128
        $region56: #{tpu_custom_call.1} parent=51 // pred_fallthru
          _
      $region52: #{tpu_custom_call.1} parent=5 // pred_fallthru
        _
    $region6: #{tpu_custom_call.1} parent=1 // loop_footer
      %s21 = sadd.s32 1, %s17
    $region7: #{tpu_custom_call.1} parent=1 // loop_footer_branch
      %16 = sbr.rel target = $region3
    $region8: #{tpu_custom_call.1} parent=1 // loop_exit
      _
    %627 = vsyncpa [#allocation6], 1
    %s628 = scalar_lea.sflag [#allocation6], 1
    %629 = vsyncpa %s628, 1
    %630 = vsyncpa [#allocation9], 1
    %s631 = scalar_lea.sflag [#allocation9], 1
    %632 = vsyncpa %s631, 1
    %633 = vsyncpa [#allocation7], 1
    %s634 = scalar_lea.sflag [#allocation7], 1
    %635 = vsyncpa %s634, 1

</llo_original>
